<compile_context>
chip_gen: v7x
topology: tpu7x:2x2x1
jax: 0.10.0
libtpu: 0.0.40
codegen_flags: <defaults>
</compile_context>

<pallas_src>
import math
import jax
import jax.numpy as jnp
from jax.experimental import pallas as pl
from jax.experimental.pallas import tpu as pltpu


def _round_up(v, m):
    return ((v + m - 1) // m) * m


def _row_tiling(n):
    """Pick (rows-per-block, n_blocks). >=2 blocks for N>=32 (v7x has 2 TCs)."""
    if n < 32:
        return _round_up(max(n, 8), 16), 1
    target = 256
    n_blocks = max(2, pl.cdiv(n, target))
    nb = min(_round_up(pl.cdiv(n, n_blocks), 16), 512)
    n_blocks = pl.cdiv(n, nb)
    return nb, n_blocks


def _resident_spec(shape):
    """Full-array, grid-invariant operand: single-buffer it (no pipelining win)."""
    try:
        return pl.BlockSpec(shape, lambda i: (0, 0), pipeline_mode=pl.Buffered(1))
    except (TypeError, AttributeError):       # older pallas without pipeline_mode
        return pl.BlockSpec(shape, lambda i: (0, 0))


# ----------------------------- fused Pallas kernel -----------------------------

def _fused_cnn_kernel(x_ref, wc_ref, bc_ref, w1_ref, b1_ref, w2_ref, o_ref):
    # x_ref : (NB, Kp)  bf16   flattened (channels-major) input, K padded to 128
    # wc_ref: (Kp, Fp)  bf16   Toeplitz conv weight (conv padding folded in)
    # bc_ref: (1, Fp)   f32    conv bias in (l, co) feature layout
    # w1_ref: (Fp, Hp)  bf16   fc1 weight (rows permuted to (l, co) order, padded)
    # b1_ref: (1, Hp)   f32
    # w2_ref: (1, Hp)   f32    fc2 weight row (padded hidden columns are zero)
    # o_ref : (1, 1, NB) f32   lane-dense output row for this batch tile
    conv = jnp.dot(x_ref[...], wc_ref[...], preferred_element_type=jnp.float32)
    feat = jnp.maximum(conv + bc_ref[...], 0.0)                       # (NB, Fp) f32

    h = jnp.dot(feat.astype(jnp.bfloat16), w1_ref[...],
                preferred_element_type=jnp.float32)
    h = jnp.maximum(h + b1_ref[...], 0.0)                             # (NB, Hp) f32

    # fc2: single output column -> VPU multiply + XLU lane reduction (no 1-wide MXU
    # matmul); result is re-laid out as a lane-dense (1, 1, NB) row.
    row = jnp.sum(h * w2_ref[...], axis=-1)                           # (NB,)
    o_ref[...] = row[None, None, :]


# ---------------------------- jitted forward wrapper ----------------------------

@jax.jit
def _fused_forward(x, wc, bc, w1p, b1p, w2p, b2):
    n, c_in, length = x.shape
    kdim = c_in * length
    k_pad, f_pad = wc.shape
    h_pad = w1p.shape[1]

    nb, n_blocks = _row_tiling(n)
    n_pad = nb * n_blocks

    # Glue (fused under jit): channels-major flatten, pad batch + K dim, cast bf16.
    x_flat = jnp.pad(x.reshape(n, kdim),
                     ((0, n_pad - n), (0, k_pad - kdim))).astype(jnp.bfloat16)

    # Explicit scoped-VMEM request (v5e default is only 16 MiB), capped for v7x.
    weight_bytes = wc.size * 2 + w1p.size * 2 + (bc.size + b1p.size + w2p.size) * 4
    block_bytes = 2 * nb * k_pad * 2 + 2 * nb * 4
    act_bytes = 2 * nb * (f_pad + h_pad) * 4
    est = (weight_bytes + block_bytes + act_bytes) * 3 // 2
    vmem_limit = int(min(max(est, 32 << 20), 64 << 20))

    out = pl.pallas_call(
        _fused_cnn_kernel,
        out_shape=jax.ShapeDtypeStruct((n_blocks, 1, nb), jnp.float32),
        grid_spec=pltpu.PrefetchScalarGridSpec(
            num_scalar_prefetch=0,
            grid=(n_blocks,),
            in_specs=[
                pl.BlockSpec((nb, k_pad), lambda i: (i, 0)),   # batch tile (pipelined)
                _resident_spec(wc.shape),                       # single-buffered weights
                _resident_spec(bc.shape),
                _resident_spec(w1p.shape),
                _resident_spec(b1p.shape),
                _resident_spec(w2p.shape),
            ],
            out_specs=pl.BlockSpec((1, 1, nb), lambda i: (i, 0, 0)),
        ),
        compiler_params=pltpu.CompilerParams(
            dimension_semantics=("parallel",),
            vmem_limit_bytes=vmem_limit),
    )(x_flat, wc, bc, w1p, b1p, w2p)

    # fc2 bias added here (scalar) — fused with the slice under jit.
    return out.reshape(-1)[:n] + b2[0]


# ------------------------------- module wrapper --------------------------------

class CNN1ConvPallas:
    HIDDEN = 1000

    def __init__(self, key, in_channels, out_channels, kernel_size, in_length, stride):
        # `stride` is accepted but unused — the PyTorch module never passes it to
        # nn.Conv1d, so the conv stride is 1.
        del stride
        self.in_channels = in_channels
        self.out_channels = out_channels
        self.kernel_size = kernel_size
        self.in_length = in_length
        self.pad = kernel_size // 2
        self.conv1_out = in_length + 2 * self.pad - kernel_size + 1
        hidden = self.HIDDEN

        k = jax.random.split(key, 6)

        # Deterministic init mimicking PyTorch defaults: U(-1/sqrt(fan_in), +...).
        def uinit(kk, shape, fan_in):
            bound = 1.0 / math.sqrt(fan_in)
            return jax.random.uniform(kk, shape, jnp.float32, -bound, bound)

        conv_fan_in = in_channels * kernel_size
        self.conv_w = uinit(k[0], (out_channels, in_channels, kernel_size), conv_fan_in)
        self.conv_b = uinit(k[1], (out_channels,), conv_fan_in)

        f = self.conv1_out * out_channels
        self.fc1_w = uinit(k[2], (hidden, f), f)      # PyTorch Linear weight (out, in)
        self.fc1_b = uinit(k[3], (hidden,), f)
        self.fc2_w = uinit(k[4], (1, hidden), hidden)
        self.fc2_b = uinit(k[5], (1,), hidden)

        # ------ one-time weight transforms (hoisted out of the forward pass) ------
        c_in, c_out = in_channels, out_channels
        L, l_out, K, pad = in_length, self.conv1_out, kernel_size, self.pad
        kdim = c_in * L
        k_pad = _round_up(kdim, 128)
        f_pad = _round_up(f, 128)
        h_pad = _round_up(hidden, 128)

        # Toeplitz conv weight built against the UNPADDED input (conv zero-padding is
        # folded in by dropping out-of-range taps at the edges):
        #   wc[ci*L + p, l*Cout + co] = conv_w[co, ci, p - l + pad]   (0 if tap invalid)
        # so feat[n, l*Cout+co] = sum_{ci,p} x[n,ci,p] * wc[...] == Conv1d(padding=pad).
        wc4 = jnp.zeros((c_in, L, l_out, c_out), jnp.float32)
        for tap in range(K):                                         # K is tiny/static
            off = tap - pad
            lo, hi = max(0, -off), min(l_out, L - off)
            if hi <= lo:
                continue
            l_valid = jnp.arange(lo, hi)
            w_tap = self.conv_w[:, :, tap].T                         # (Cin, Cout)
            wc4 = wc4.at[:, l_valid + off, l_valid, :].set(
                jnp.broadcast_to(w_tap[:, None, :], (c_in, hi - lo, c_out)))
        wc = wc4.reshape(kdim, f)
        self.wc = jnp.pad(wc, ((0, k_pad - kdim), (0, f_pad - f))).astype(jnp.bfloat16)

        # Conv bias broadcast to the kernel's (l, co) flattened feature layout.
        self.bc = jnp.pad(jnp.tile(self.conv_b, l_out)[None, :],
                          ((0, 0), (0, f_pad - f)))                  # (1, Fp) f32

        # fc1: transpose to (F, H); permute rows so the kernel's (l, co) feature order
        # matches PyTorch's (co, l) flatten order; zero-pad F rows and H -> 1024 cols.
        perm = (jnp.arange(c_out)[None, :] * l_out
                + jnp.arange(l_out)[:, None]).reshape(-1)
        w1p = self.fc1_w.T[perm, :]                                  # (F, H)
        self.w1p = jnp.pad(w1p, ((0, f_pad - f), (0, h_pad - hidden))).astype(jnp.bfloat16)
        self.b1p = jnp.pad(self.fc1_b, (0, h_pad - hidden))[None, :]  # (1, Hp) f32

        # fc2: single row, zero-padded so the extra hidden columns are inert; the scalar
        # bias is kept outside the kernel (added in the jitted wrapper).
        self.w2p = jnp.pad(self.fc2_w, ((0, 0), (0, h_pad - hidden)))  # (1, Hp) f32
        self.b2 = self.fc2_b                                           # (1,)  f32

    def __call__(self, x):
        # x: (N, C_in, L) float32
        n, c_in, length = x.shape
        assert c_in == self.in_channels and length == self.in_length
        return _fused_forward(x, self.wc, self.bc, self.w1p, self.b1p, self.w2p, self.b2)


# -------------------------- pure-JAX f32 reference ----------------------------

def _reference_forward(model, x):
    n = x.shape[0]
    xp = jnp.pad(x, ((0, 0), (0, 0), (model.pad, model.pad)))
    idx = jnp.arange(model.conv1_out)[:, None] + jnp.arange(model.kernel_size)[None, :]
    patches = xp[:, :, idx]                                           # (N, Cin, Lout, K)
    y = jnp.einsum('nclk,ock->nol', patches, model.conv_w) + model.conv_b[None, :, None]
    y = jnp.maximum(y, 0.0)
    feat = y.reshape(n, -1)                                           # PyTorch flatten order
    h = jnp.maximum(feat @ model.fc1_w.T + model.fc1_b, 0.0)
    out = h @ model.fc2_w.T + model.fc2_b
    return out.reshape(n)


# ------------------------------------ main -------------------------------------

if __name__ == "__main__":
    key = jax.random.PRNGKey(0)
    key_params, key_x1, key_x2 = jax.random.split(key, 3)

    # Small shapes consistent with the module.
    N, C_IN, C_OUT, K, L = 2, 4, 8, 3, 16

    model = CNN1ConvPallas(key_params, in_channels=C_IN, out_channels=C_OUT,
                           kernel_size=K, in_length=L, stride=1)

    def _check(xx):
        yy = model(xx)
        jax.block_until_ready(yy)
        assert yy.shape == (xx.shape[0],)
        yy_ref = _reference_forward(model, xx)
        err = float(jnp.max(jnp.abs(yy - yy_ref)))
        scale = float(jnp.maximum(jnp.max(jnp.abs(yy_ref)), 1.0))
        # Loose tolerance: kernel uses bf16 MXU operands with f32 accumulation.
        assert err <= 0.05 * scale, (err, scale)

    _check(jax.random.normal(key_x1, (N, C_IN, L), dtype=jnp.float32))        # 1 block
    _check(jax.random.normal(key_x2, (48, C_IN, L), dtype=jnp.float32))       # 2 blocks

    print("KERNEL_OK")
</pallas_src>

<mosaic_0001>
module attributes {stable_mosaic.version = 11 : i64} {
  func.func @_fused_cnn_kernel(%arg0: i32, %arg1: memref<16x128xbf16, #tpu.memory_space<vmem>>, %arg2: memref<128x128xbf16, #tpu.memory_space<vmem>>, %arg3: memref<1x128xf32, #tpu.memory_space<vmem>>, %arg4: memref<128x1024xbf16, #tpu.memory_space<vmem>>, %arg5: memref<1x1024xf32, #tpu.memory_space<vmem>>, %arg6: memref<1x1024xf32, #tpu.memory_space<vmem>>, %arg7: memref<1x1x16xf32, #tpu.memory_space<vmem>>) attributes {dimension_semantics = [#tpu.dimension_semantics<parallel>], iteration_bounds = array<i64: 1>, scalar_prefetch = 0 : i64, scratch_operands = 0 : i64, tpu.core_type = #tpu.core_type<tc>, window_params = [{transform_indices = @transform_0, window_bounds = array<i64: 16, 128>}, {pipeline_mode = #tpu.pipeline_mode<synchronous>, transform_indices = @transform_1, window_bounds = array<i64: 128, 128>}, {pipeline_mode = #tpu.pipeline_mode<synchronous>, transform_indices = @transform_2, window_bounds = array<i64: 1, 128>}, {pipeline_mode = #tpu.pipeline_mode<synchronous>, transform_indices = @transform_3, window_bounds = array<i64: 128, 1024>}, {pipeline_mode = #tpu.pipeline_mode<synchronous>, transform_indices = @transform_4, window_bounds = array<i64: 1, 1024>}, {pipeline_mode = #tpu.pipeline_mode<synchronous>, transform_indices = @transform_5, window_bounds = array<i64: 1, 1024>}, {transform_indices = @transform_6, window_bounds = array<i64: 1, 1, 16>}]} {
    %c0 = arith.constant 0 : index
    %c0_0 = arith.constant 0 : index
    %0 = vector.load %arg1[%c0, %c0_0] : memref<16x128xbf16, #tpu.memory_space<vmem>>, vector<16x128xbf16>
    %c0_1 = arith.constant 0 : index
    %c0_2 = arith.constant 0 : index
    %1 = vector.load %arg2[%c0_1, %c0_2] : memref<128x128xbf16, #tpu.memory_space<vmem>>, vector<128x128xbf16>
    %cst = arith.constant dense<0.000000e+00> : vector<16x128xf32>
    %2 = tpu.matmul %0, %1, %cst {dimension_numbers = #tpu.dot_dimension_numbers<[1], [0], [0], [1], [0, 0, 1, 1], [], []>} : vector<16x128xbf16>, vector<128x128xbf16>, vector<16x128xf32> -> vector<16x128xf32>
    %c0_3 = arith.constant 0 : index
    %c0_4 = arith.constant 0 : index
    %3 = vector.load %arg3[%c0_3, %c0_4] : memref<1x128xf32, #tpu.memory_space<vmem>>, vector<1x128xf32>
    %4 = vector.broadcast %3 : vector<1x128xf32> to vector<16x128xf32>
    %5 = arith.addf %2, %4 : vector<16x128xf32>
    %cst_5 = arith.constant 0.000000e+00 : f32
    %6 = vector.broadcast %cst_5 : f32 to vector<16x128xf32>
    %7 = arith.maximumf %5, %6 : vector<16x128xf32>
    %8 = arith.truncf %7 : vector<16x128xf32> to vector<16x128xbf16>
    %c0_6 = arith.constant 0 : index
    %c0_7 = arith.constant 0 : index
    %9 = vector.load %arg4[%c0_6, %c0_7] : memref<128x1024xbf16, #tpu.memory_space<vmem>>, vector<128x1024xbf16>
    %cst_8 = arith.constant dense<0.000000e+00> : vector<16x1024xf32>
    %10 = tpu.matmul %8, %9, %cst_8 {dimension_numbers = #tpu.dot_dimension_numbers<[1], [0], [0], [1], [0, 0, 1, 1], [], []>} : vector<16x128xbf16>, vector<128x1024xbf16>, vector<16x1024xf32> -> vector<16x1024xf32>
    %c0_9 = arith.constant 0 : index
    %c0_10 = arith.constant 0 : index
    %11 = vector.load %arg5[%c0_9, %c0_10] : memref<1x1024xf32, #tpu.memory_space<vmem>>, vector<1x1024xf32>
    %12 = vector.broadcast %11 : vector<1x1024xf32> to vector<16x1024xf32>
    %13 = arith.addf %10, %12 : vector<16x1024xf32>
    %cst_11 = arith.constant 0.000000e+00 : f32
    %14 = vector.broadcast %cst_11 : f32 to vector<16x1024xf32>
    %15 = arith.maximumf %13, %14 : vector<16x1024xf32>
    %c0_12 = arith.constant 0 : index
    %c0_13 = arith.constant 0 : index
    %16 = vector.load %arg6[%c0_12, %c0_13] : memref<1x1024xf32, #tpu.memory_space<vmem>>, vector<1x1024xf32>
    %17 = vector.broadcast %16 : vector<1x1024xf32> to vector<16x1024xf32>
    %18 = arith.mulf %15, %17 : vector<16x1024xf32>
    %cst_14 = arith.constant dense<0.000000e+00> : vector<16xf32>
    %19 = vector.multi_reduction <add>, %18, %cst_14 [1] : vector<16x1024xf32> to vector<16xf32>
    %20 = vector.shape_cast %19 : vector<16xf32> to vector<1x1x16xf32>
    %c0_15 = arith.constant 0 : index
    %c0_16 = arith.constant 0 : index
    %c0_17 = arith.constant 0 : index
    %21 = vector.load %arg7[%c0_15, %c0_16, %c0_17] : memref<1x1x16xf32, #tpu.memory_space<vmem>>, vector<1x1x16xf32>
    tpu.vector_store %arg7[%c0_15, %c0_16, %c0_17], %20 {strides = array<i32>} : memref<1x1x16xf32, #tpu.memory_space<vmem>>, vector<1x1x16xf32>,
    return
  }
  func.func @transform_0(%arg0: i32) -> (i32, i32) {
    %c0_i32 = arith.constant 0 : i32
    %c0_i32_0 = arith.constant 0 : i32
    return %arg0, %c0_i32 : i32, i32
  }
  func.func @transform_1(%arg0: i32) -> (i32, i32) {
    %c0_i32 = arith.constant 0 : i32
    %c0_i32_0 = arith.constant 0 : i32
    %c0_i32_1 = arith.constant 0 : i32
    return %c0_i32, %c0_i32_0 : i32, i32
  }
  func.func @transform_2(%arg0: i32) -> (i32, i32) {
    %c0_i32 = arith.constant 0 : i32
    %c0_i32_0 = arith.constant 0 : i32
    %c0_i32_1 = arith.constant 0 : i32
    return %c0_i32, %c0_i32_0 : i32, i32
  }
  func.func @transform_3(%arg0: i32) -> (i32, i32) {
    %c0_i32 = arith.constant 0 : i32
    %c0_i32_0 = arith.constant 0 : i32
    %c0_i32_1 = arith.constant 0 : i32
    return %c0_i32, %c0_i32_0 : i32, i32
  }
  func.func @transform_4(%arg0: i32) -> (i32, i32) {
    %c0_i32 = arith.constant 0 : i32
    %c0_i32_0 = arith.constant 0 : i32
    %c0_i32_1 = arith.constant 0 : i32
    return %c0_i32, %c0_i32_0 : i32, i32
  }
  func.func @transform_5(%arg0: i32) -> (i32, i32) {
    %c0_i32 = arith.constant 0 : i32
    %c0_i32_0 = arith.constant 0 : i32
    %c0_i32_1 = arith.constant 0 : i32
    return %c0_i32, %c0_i32_0 : i32, i32
  }
  func.func @transform_6(%arg0: i32) -> (i32, i32, i32) {
    %c0_i32 = arith.constant 0 : i32
    %c0_i32_0 = arith.constant 0 : i32
    %c0_i32_1 = arith.constant 0 : i32
    return %arg0, %c0_i32, %c0_i32_0 : i32, i32, i32
  }
}

</mosaic_0001>

<llo_original>
// kernel: _fused_forward.1
$region0: #{_fused_forward.1}
  #allocation0 [shape = 'u32[]', space=smem, size = 0x4, offset = 0x4, fixed_abs, tag = 'smem constant byte address 0x4 - core index']
  #allocation1 [shape = 'u32[144,128]{1,0:T(1,128)}', space=vmem, size = 0x12000, scoped, tag = 'internal scratch']
  %s0 = inlined_call_operand.vmem [shape: bf16[16,128], index: 0, kind: input, shape index: {}]
  %s1 = inlined_call_operand.hbm [shape: bf16[128,128], index: 1, kind: input, shape index: {}]
  %s2 = inlined_call_operand.vmem [shape: f32[1,128], index: 2, kind: input, shape index: {}]
  %s3 = inlined_call_operand.hbm [shape: bf16[128,1024], index: 3, kind: input, shape index: {}]
  %s4 = inlined_call_operand.vmem [shape: f32[1,1024], index: 4, kind: input, shape index: {}]
  %s5 = inlined_call_operand.vmem [shape: f32[1,1024], index: 5, kind: input, shape index: {}]
  %s6 = inlined_call_operand.vmem [shape: f32[1,1,16], index: 6, kind: output, shape index: {}]
  %s7 = sld [smem:[#allocation0]]
  $region42: #{_fused_forward.1} parent=0
    _
  %s9 = ssub.s32 1, %s7
  %s10 = scalar_select 0, %s9, %s7
  $region1: #{_fused_forward.1} parent=0
    #allocation2 [shape = 'u8[32768]{0}', space=vmem, size = 0x8000, scoped, tag = 'input window, operand 1, single buffered']
    #allocation3 [shape = 's32[1]{0}', space=sflag, size = 0x4, scoped, tag = 'scoped memory for _fused_forward.1']
    #allocation4 [shape = 'u8[262144]{0}', space=vmem, size = 0x40000, scoped, tag = 'input window, operand 3, single buffered']
    #allocation5 [shape = 's32[1]{0}', space=sflag, size = 0x4, scoped, tag = 'scoped memory for _fused_forward.1']
    %11 = vsyncpa [#allocation3], 0
    %12 = vsyncpa [#allocation5], 0
    // Predicated region
    $region2: #{_fused_forward.1} parent=1 // pred_check
      _
    $region3: #{_fused_forward.1} parent=1 // pred_check_branch
      %14 = sbr.rel (0) target = $region5
    $region4: #{_fused_forward.1} parent=1 // pred_region
      _
    $region5: #{_fused_forward.1} parent=1 // pred_fallthru
      _
    // Predicated region
    $region6: #{_fused_forward.1} parent=1 // pred_check
      _
    $region7: #{_fused_forward.1} parent=1 // pred_check_branch
      %16 = sbr.rel (0) target = $region9
    $region8: #{_fused_forward.1} parent=1 // pred_region
      %s18 = ssub.s32 1024, 1024
      %19 = vsyncadd [#allocation3], %s18
      %s20 = sshll.u32 [#allocation2], 4
      %s21 = int_to_ptr.vmem [resolvable:$true] %s20
      %26 = dma.hbm_to_vmem [thread:$0]  %s1, 1024, %s21, [#allocation3], 64, 64, 4
    $region9: #{_fused_forward.1} parent=1 // pred_fallthru
      _
    // Predicated region
    $region10: #{_fused_forward.1} parent=1 // pred_check
      _
    $region11: #{_fused_forward.1} parent=1 // pred_check_branch
      %28 = sbr.rel (0) target = $region13
    $region12: #{_fused_forward.1} parent=1 // pred_region
      _
    $region13: #{_fused_forward.1} parent=1 // pred_fallthru
      _
    // Predicated region
    $region14: #{_fused_forward.1} parent=1 // pred_check
      _
    $region15: #{_fused_forward.1} parent=1 // pred_check_branch
      %30 = sbr.rel (0) target = $region17
    $region16: #{_fused_forward.1} parent=1 // pred_region
      %s32 = ssub.s32 8192, 8192
      %33 = vsyncadd [#allocation5], %s32
      %s34 = sshll.u32 [#allocation4], 4
      %s35 = int_to_ptr.vmem [resolvable:$true] %s34
      %40 = dma.hbm_to_vmem [thread:$0]  %s3, 8192, %s35, [#allocation5], 512, 512, 32
    $region17: #{_fused_forward.1} parent=1 // pred_fallthru
      _
    // Predicated region
    $region18: #{_fused_forward.1} parent=1 // pred_check
      _
    $region19: #{_fused_forward.1} parent=1 // pred_check_branch
      %42 = sbr.rel (0) target = $region21
    $region20: #{_fused_forward.1} parent=1 // pred_region
      _
    $region21: #{_fused_forward.1} parent=1 // pred_fallthru
      _
    // Predicated region
    $region22: #{_fused_forward.1} parent=1 // pred_check
      _
    $region23: #{_fused_forward.1} parent=1 // pred_check_branch
      %44 = sbr.rel (0) target = $region25
    $region24: #{_fused_forward.1} parent=1 // pred_region
      _
    $region25: #{_fused_forward.1} parent=1 // pred_fallthru
      _
    // Predicated region
    $region26: #{_fused_forward.1} parent=1 // pred_check
      _
    $region27: #{_fused_forward.1} parent=1 // pred_check_branch
      %46 = sbr.rel (0) target = $region29
    $region28: #{_fused_forward.1} parent=1 // pred_region
      %47 = dma.done [#allocation3], 1024
    $region29: #{_fused_forward.1} parent=1 // pred_fallthru
      _
    // Predicated region
    $region30: #{_fused_forward.1} parent=1 // pred_check
      _
    $region31: #{_fused_forward.1} parent=1 // pred_check_branch
      %49 = sbr.rel (0) target = $region33
    $region32: #{_fused_forward.1} parent=1 // pred_region
      %50 = dma.done [#allocation5], 8192
    $region33: #{_fused_forward.1} parent=1 // pred_fallthru
      _
    %v52 = vld [vmem:[%s0] sm:$0xf]
    %v53 = vld [vmem:[%s0 + $0x4] sm:$0xf]
    %v54 = vld [vmem:[#allocation2] sm:$0xf]
    %v55 = vld [vmem:[#allocation2 + $0x4] sm:$0xf]
    %v56 = vld [vmem:[#allocation2 + $0x8] sm:$0xf]
    %v57 = vld [vmem:[#allocation2 + $0xc] sm:$0xf]
    %v58 = vld [vmem:[#allocation2 + $0x10] sm:$0xf]
    %v59 = vld [vmem:[#allocation2 + $0x14] sm:$0xf]
    %v60 = vld [vmem:[#allocation2 + $0x18] sm:$0xf]
    %v61 = vld [vmem:[#allocation2 + $0x1c] sm:$0xf]
    %v62 = vld [vmem:[#allocation2 + $0x20] sm:$0xf]
    %v63 = vld [vmem:[#allocation2 + $0x24] sm:$0xf]
    %v64 = vld [vmem:[#allocation2 + $0x28] sm:$0xf]
    %v65 = vld [vmem:[#allocation2 + $0x2c] sm:$0xf]
    %v66 = vld [vmem:[#allocation2 + $0x30] sm:$0xf]
    %v67 = vld [vmem:[#allocation2 + $0x34] sm:$0xf]
    %v68 = vld [vmem:[#allocation2 + $0x38] sm:$0xf]
    %v69 = vld [vmem:[#allocation2 + $0x3c] sm:$0xf]
    %v70 = vld [vmem:[%s2] sm:$0x1]
    %v72 = vlaneseq
    %v73 = vshrl.u32 %v72, 7
    %v74 = vsub.s32 0, %v73
    %v75 = vrot.slane %v70, %v74
    %v79 = vunpack.c.l.b16 %v52
    %v80 = vunpack.c.l.b16 %v53
    %v81 = vpack.c.b16 %v80, %v79
    %v99 = vunpack.c.l.b16 %v54
    %v100 = vunpack.c.l.b16 %v55
    %v101 = vunpack.c.l.b16 %v56
    %v102 = vunpack.c.l.b16 %v57
    %v103 = vunpack.c.l.b16 %v58
    %v104 = vunpack.c.l.b16 %v59
    %v105 = vunpack.c.l.b16 %v60
    %v106 = vunpack.c.l.b16 %v61
    %v107 = vunpack.c.l.b16 %v62
    %v108 = vunpack.c.l.b16 %v63
    %v109 = vunpack.c.l.b16 %v64
    %v110 = vunpack.c.l.b16 %v65
    %v111 = vunpack.c.l.b16 %v66
    %v112 = vunpack.c.l.b16 %v67
    %v113 = vunpack.c.l.b16 %v68
    %v114 = vunpack.c.l.b16 %v69
    %v115 = vpack.c.b16 %v100, %v99
    %v116 = vpack.c.b16 %v102, %v101
    %v117 = vpack.c.b16 %v104, %v103
    %v118 = vpack.c.b16 %v106, %v105
    %v119 = vpack.c.b16 %v108, %v107
    %v120 = vpack.c.b16 %v110, %v109
    %v121 = vpack.c.b16 %v112, %v111
    %v122 = vpack.c.b16 %v114, %v113
    %131 = vmatprep.subr.bf16.mxu0 0
    %132 = vmatpush1.bf16.msra.mxu0 %v115
    %133 = vmatprep.subr.bf16.mxu0 0
    %134 = vmatpush1.bf16.msra.mxu0 %v116
    %135 = vmatprep.subr.bf16.mxu0 0
    %136 = vmatpush1.bf16.msra.mxu0 %v117
    %137 = vmatprep.subr.bf16.mxu0 0
    %138 = vmatpush1.bf16.msra.mxu0 %v118
    %139 = vmatprep.subr.bf16.mxu0 0
    %140 = vmatpush1.bf16.msra.mxu0 %v119
    %141 = vmatprep.subr.bf16.mxu0 0
    %142 = vmatpush1.bf16.msra.mxu0 %v120
    %143 = vmatprep.subr.bf16.mxu0 0
    %144 = vmatpush1.bf16.msra.mxu0 %v121
    %145 = vmatprep.subr.bf16.mxu0 0
    %146 = vmatpush1.bf16.msra.mxu0 %v122
    %147 = vmatprep.subr.bf16.mxu0 0
    %148 = vmatpush1.bf16.msra.mxu0 0
    %149 = vmatprep.subr.bf16.mxu0 0
    %150 = vmatpush1.bf16.msra.mxu0 0
    %151 = vmatprep.subr.bf16.mxu0 0
    %152 = vmatpush1.bf16.msra.mxu0 0
    %153 = vmatprep.subr.bf16.mxu0 0
    %154 = vmatpush1.bf16.msra.mxu0 0
    %155 = vmatprep.subr.bf16.mxu0 0
    %156 = vmatpush1.bf16.msra.mxu0 0
    %157 = vmatprep.subr.bf16.mxu0 0
    %158 = vmatpush1.bf16.msra.mxu0 0
    %159 = vmatprep.subr.bf16.mxu0 0
    %160 = vmatpush1.bf16.msra.mxu0 0
    %161 = vmatprep.subr.bf16.mxu0 0
    %162 = vmatpush1.bf16.msra.mxu0 0
    %163 = vmatprep.mubr.bf16.mxu0 0
    %164 = vmatmul.mubr.bf16.gmra.mrb[0].mxu0 %v81
    %v165 = vpop.f32.mrb[0].mxu0
    %v166 = vadd.f32 %v75, %v165
    %v167 = vpop.f32.mrb[0].mxu0
    %v168 = vpop.f32.mrb[0].mxu0
    %v169 = vadd.f32 %v75, %v168
    %v170 = vpop.f32.mrb[0].mxu0
    %171 = vdwg.mxu0
    %v172 = vmax.f32 %v166, 0.0
    %v173 = vmax.f32 %v169, 0.0
    %v174 = vpack.c.bf16 %v173, %v172
    %v175 = vld [vmem:[#allocation4] sm:$0xff]
    %v176 = vld [vmem:[#allocation4 + $0x8] sm:$0xff]
    %v177 = vld [vmem:[#allocation4 + $0x10] sm:$0xff]
    %v178 = vld [vmem:[#allocation4 + $0x18] sm:$0xff]
    %v179 = vld [vmem:[#allocation4 + $0x20] sm:$0xff]
    %v180 = vld [vmem:[#allocation4 + $0x28] sm:$0xff]
    %v181 = vld [vmem:[#allocation4 + $0x30] sm:$0xff]
    %v182 = vld [vmem:[#allocation4 + $0x38] sm:$0xff]
    %v183 = vld [vmem:[#allocation4 + $0x40] sm:$0xff]
    %v184 = vld [vmem:[#allocation4 + $0x48] sm:$0xff]
    %v185 = vld [vmem:[#allocation4 + $0x50] sm:$0xff]
    %v186 = vld [vmem:[#allocation4 + $0x58] sm:$0xff]
    %v187 = vld [vmem:[#allocation4 + $0x60] sm:$0xff]
    %v188 = vld [vmem:[#allocation4 + $0x68] sm:$0xff]
    %v189 = vld [vmem:[#allocation4 + $0x70] sm:$0xff]
    %v190 = vld [vmem:[#allocation4 + $0x78] sm:$0xff]
    %v191 = vld [vmem:[#allocation4 + $0x80] sm:$0xff]
    %v192 = vld [vmem:[#allocation4 + $0x88] sm:$0xff]
    %v193 = vld [vmem:[#allocation4 + $0x90] sm:$0xff]
    %v194 = vld [vmem:[#allocation4 + $0x98] sm:$0xff]
    %v195 = vld [vmem:[#allocation4 + $0xa0] sm:$0xff]
    %v196 = vld [vmem:[#allocation4 + $0xa8] sm:$0xff]
    %v197 = vld [vmem:[#allocation4 + $0xb0] sm:$0xff]
    %v198 = vld [vmem:[#allocation4 + $0xb8] sm:$0xff]
    %v199 = vld [vmem:[#allocation4 + $0xc0] sm:$0xff]
    %v200 = vld [vmem:[#allocation4 + $0xc8] sm:$0xff]
    %v201 = vld [vmem:[#allocation4 + $0xd0] sm:$0xff]
    %v202 = vld [vmem:[#allocation4 + $0xd8] sm:$0xff]
    %v203 = vld [vmem:[#allocation4 + $0xe0] sm:$0xff]
    %v204 = vld [vmem:[#allocation4 + $0xe8] sm:$0xff]
    %v205 = vld [vmem:[#allocation4 + $0xf0] sm:$0xff]
    %v206 = vld [vmem:[#allocation4 + $0xf8] sm:$0xff]
    %v207 = vld [vmem:[#allocation4 + $0x100] sm:$0xff]
    %v208 = vld [vmem:[#allocation4 + $0x108] sm:$0xff]
    %v209 = vld [vmem:[#allocation4 + $0x110] sm:$0xff]
    %v210 = vld [vmem:[#allocation4 + $0x118] sm:$0xff]
    %v211 = vld [vmem:[#allocation4 + $0x120] sm:$0xff]
    %v212 = vld [vmem:[#allocation4 + $0x128] sm:$0xff]
    %v213 = vld [vmem:[#allocation4 + $0x130] sm:$0xff]
    %v214 = vld [vmem:[#allocation4 + $0x138] sm:$0xff]
    %v215 = vld [vmem:[#allocation4 + $0x140] sm:$0xff]
    %v216 = vld [vmem:[#allocation4 + $0x148] sm:$0xff]
    %v217 = vld [vmem:[#allocation4 + $0x150] sm:$0xff]
    %v218 = vld [vmem:[#allocation4 + $0x158] sm:$0xff]
    %v219 = vld [vmem:[#allocation4 + $0x160] sm:$0xff]
    %v220 = vld [vmem:[#allocation4 + $0x168] sm:$0xff]
    %v221 = vld [vmem:[#allocation4 + $0x170] sm:$0xff]
    %v222 = vld [vmem:[#allocation4 + $0x178] sm:$0xff]
    %v223 = vld [vmem:[#allocation4 + $0x180] sm:$0xff]
    %v224 = vld [vmem:[#allocation4 + $0x188] sm:$0xff]
    %v225 = vld [vmem:[#allocation4 + $0x190] sm:$0xff]
    %v226 = vld [vmem:[#allocation4 + $0x198] sm:$0xff]
    %v227 = vld [vmem:[#allocation4 + $0x1a0] sm:$0xff]
    %v228 = vld [vmem:[#allocation4 + $0x1a8] sm:$0xff]
    %v229 = vld [vmem:[#allocation4 + $0x1b0] sm:$0xff]
    %v230 = vld [vmem:[#allocation4 + $0x1b8] sm:$0xff]
    %v231 = vld [vmem:[#allocation4 + $0x1c0] sm:$0xff]
    %v232 = vld [vmem:[#allocation4 + $0x1c8] sm:$0xff]
    %v233 = vld [vmem:[#allocation4 + $0x1d0] sm:$0xff]
    %v234 = vld [vmem:[#allocation4 + $0x1d8] sm:$0xff]
    %v235 = vld [vmem:[#allocation4 + $0x1e0] sm:$0xff]
    %v236 = vld [vmem:[#allocation4 + $0x1e8] sm:$0xff]
    %v237 = vld [vmem:[#allocation4 + $0x1f0] sm:$0xff]
    %v238 = vld [vmem:[#allocation4 + $0x1f8] sm:$0xff]
    %v239 = vld [vmem:[%s4] sm:$0xff]
    %v241 = vlaneseq
    %v242 = vshrl.u32 %v241, 7
    %v243 = vsub.s32 0, %v242
    %v244 = vrot.slane %v239, %v243
    %v245 = vlaneseq
    %v246 = vshrl.u32 %v245, 7
    %v247 = vsub.s32 1, %v246
    %v248 = vrot.slane %v239, %v247
    %v249 = vlaneseq
    %v250 = vshrl.u32 %v249, 7
    %v251 = vsub.s32 2, %v250
    %v252 = vrot.slane %v239, %v251
    %v253 = vlaneseq
    %v254 = vshrl.u32 %v253, 7
    %v255 = vsub.s32 3, %v254
    %v256 = vrot.slane %v239, %v255
    %v257 = vlaneseq
    %v258 = vshrl.u32 %v257, 7
    %v259 = vsub.s32 4, %v258
    %v260 = vrot.slane %v239, %v259
    %v261 = vlaneseq
    %v262 = vshrl.u32 %v261, 7
    %v263 = vsub.s32 5, %v262
    %v264 = vrot.slane %v239, %v263
    %v265 = vlaneseq
    %v266 = vshrl.u32 %v265, 7
    %v267 = vsub.s32 6, %v266
    %v268 = vrot.slane %v239, %v267
    %v269 = vlaneseq
    %v270 = vshrl.u32 %v269, 7
    %v271 = vsub.s32 7, %v270
    %v272 = vrot.slane %v239, %v271
    %v345 = vunpack.c.l.b16 %v175
    %v346 = vunpack.c.h.b16 %v175
    %v347 = vunpack.c.l.b16 %v176
    %v348 = vunpack.c.h.b16 %v176
    %v349 = vunpack.c.l.b16 %v177
    %v350 = vunpack.c.h.b16 %v177
    %v351 = vunpack.c.l.b16 %v178
    %v352 = vunpack.c.h.b16 %v178
    %v353 = vunpack.c.l.b16 %v179
    %v354 = vunpack.c.h.b16 %v179
    %v355 = vunpack.c.l.b16 %v180
    %v356 = vunpack.c.h.b16 %v180
    %v357 = vunpack.c.l.b16 %v181
    %v358 = vunpack.c.h.b16 %v181
    %v359 = vunpack.c.l.b16 %v182
    %v360 = vunpack.c.h.b16 %v182
    %v361 = vunpack.c.l.b16 %v183
    %v362 = vunpack.c.h.b16 %v183
    %v363 = vunpack.c.l.b16 %v184
    %v364 = vunpack.c.h.b16 %v184
    %v365 = vunpack.c.l.b16 %v185
    %v366 = vunpack.c.h.b16 %v185
    %v367 = vunpack.c.l.b16 %v186
    %v368 = vunpack.c.h.b16 %v186
    %v369 = vunpack.c.l.b16 %v187
    %v370 = vunpack.c.h.b16 %v187
    %v371 = vunpack.c.l.b16 %v188
    %v372 = vunpack.c.h.b16 %v188
    %v373 = vunpack.c.l.b16 %v189
    %v374 = vunpack.c.h.b16 %v189
    %v375 = vunpack.c.l.b16 %v190
    %v376 = vunpack.c.h.b16 %v190
    %v377 = vunpack.c.l.b16 %v191
    %v378 = vunpack.c.h.b16 %v191
    %v379 = vunpack.c.l.b16 %v192
    %v380 = vunpack.c.h.b16 %v192
    %v381 = vunpack.c.l.b16 %v193
    %v382 = vunpack.c.h.b16 %v193
    %v383 = vunpack.c.l.b16 %v194
    %v384 = vunpack.c.h.b16 %v194
    %v385 = vunpack.c.l.b16 %v195
    %v386 = vunpack.c.h.b16 %v195
    %v387 = vunpack.c.l.b16 %v196
    %v388 = vunpack.c.h.b16 %v196
    %v389 = vunpack.c.l.b16 %v197
    %v390 = vunpack.c.h.b16 %v197
    %v391 = vunpack.c.l.b16 %v198
    %v392 = vunpack.c.h.b16 %v198
    %v393 = vunpack.c.l.b16 %v199
    %v394 = vunpack.c.h.b16 %v199
    %v395 = vunpack.c.l.b16 %v200
    %v396 = vunpack.c.h.b16 %v200
    %v397 = vunpack.c.l.b16 %v201
    %v398 = vunpack.c.h.b16 %v201
    %v399 = vunpack.c.l.b16 %v202
    %v400 = vunpack.c.h.b16 %v202
    %v401 = vunpack.c.l.b16 %v203
    %v402 = vunpack.c.h.b16 %v203
    %v403 = vunpack.c.l.b16 %v204
    %v404 = vunpack.c.h.b16 %v204
    %v405 = vunpack.c.l.b16 %v205
    %v406 = vunpack.c.h.b16 %v205
    %v407 = vunpack.c.l.b16 %v206
    %v408 = vunpack.c.h.b16 %v206
    %v409 = vunpack.c.l.b16 %v207
    %v410 = vunpack.c.h.b16 %v207
    %v411 = vunpack.c.l.b16 %v208
    %v412 = vunpack.c.h.b16 %v208
    %v413 = vunpack.c.l.b16 %v209
    %v414 = vunpack.c.h.b16 %v209
    %v415 = vunpack.c.l.b16 %v210
    %v416 = vunpack.c.h.b16 %v210
    %v417 = vunpack.c.l.b16 %v211
    %v418 = vunpack.c.h.b16 %v211
    %v419 = vunpack.c.l.b16 %v212
    %v420 = vunpack.c.h.b16 %v212
    %v421 = vunpack.c.l.b16 %v213
    %v422 = vunpack.c.h.b16 %v213
    %v423 = vunpack.c.l.b16 %v214
    %v424 = vunpack.c.h.b16 %v214
    %v425 = vunpack.c.l.b16 %v215
    %v426 = vunpack.c.h.b16 %v215
    %v427 = vunpack.c.l.b16 %v216
    %v428 = vunpack.c.h.b16 %v216
    %v429 = vunpack.c.l.b16 %v217
    %v430 = vunpack.c.h.b16 %v217
    %v431 = vunpack.c.l.b16 %v218
    %v432 = vunpack.c.h.b16 %v218
    %v433 = vunpack.c.l.b16 %v219
    %v434 = vunpack.c.h.b16 %v219
    %v435 = vunpack.c.l.b16 %v220
    %v436 = vunpack.c.h.b16 %v220
    %v437 = vunpack.c.l.b16 %v221
    %v438 = vunpack.c.h.b16 %v221
    %v439 = vunpack.c.l.b16 %v222
    %v440 = vunpack.c.h.b16 %v222
    %v441 = vunpack.c.l.b16 %v223
    %v442 = vunpack.c.h.b16 %v223
    %v443 = vunpack.c.l.b16 %v224
    %v444 = vunpack.c.h.b16 %v224
    %v445 = vunpack.c.l.b16 %v225
    %v446 = vunpack.c.h.b16 %v225
    %v447 = vunpack.c.l.b16 %v226
    %v448 = vunpack.c.h.b16 %v226
    %v449 = vunpack.c.l.b16 %v227
    %v450 = vunpack.c.h.b16 %v227
    %v451 = vunpack.c.l.b16 %v228
    %v452 = vunpack.c.h.b16 %v228
    %v453 = vunpack.c.l.b16 %v229
    %v454 = vunpack.c.h.b16 %v229
    %v455 = vunpack.c.l.b16 %v230
    %v456 = vunpack.c.h.b16 %v230
    %v457 = vunpack.c.l.b16 %v231
    %v458 = vunpack.c.h.b16 %v231
    %v459 = vunpack.c.l.b16 %v232
    %v460 = vunpack.c.h.b16 %v232
    %v461 = vunpack.c.l.b16 %v233
    %v462 = vunpack.c.h.b16 %v233
    %v463 = vunpack.c.l.b16 %v234
    %v464 = vunpack.c.h.b16 %v234
    %v465 = vunpack.c.l.b16 %v235
    %v466 = vunpack.c.h.b16 %v235
    %v467 = vunpack.c.l.b16 %v236
    %v468 = vunpack.c.h.b16 %v236
    %v469 = vunpack.c.l.b16 %v237
    %v470 = vunpack.c.h.b16 %v237
    %v471 = vunpack.c.l.b16 %v238
    %v472 = vunpack.c.h.b16 %v238
    %v473 = vpack.c.b16 %v353, %v345
    %v474 = vpack.c.b16 %v354, %v346
    %v475 = vpack.c.b16 %v355, %v347
    %v476 = vpack.c.b16 %v356, %v348
    %v477 = vpack.c.b16 %v357, %v349
    %v478 = vpack.c.b16 %v358, %v350
    %v479 = vpack.c.b16 %v359, %v351
    %v480 = vpack.c.b16 %v360, %v352
    %v481 = vpack.c.b16 %v369, %v361
    %v482 = vpack.c.b16 %v370, %v362
    %v483 = vpack.c.b16 %v371, %v363
    %v484 = vpack.c.b16 %v372, %v364
    %v485 = vpack.c.b16 %v373, %v365
    %v486 = vpack.c.b16 %v374, %v366
    %v487 = vpack.c.b16 %v375, %v367
    %v488 = vpack.c.b16 %v376, %v368
    %v489 = vpack.c.b16 %v385, %v377
    %v490 = vpack.c.b16 %v386, %v378
    %v491 = vpack.c.b16 %v387, %v379
    %v492 = vpack.c.b16 %v388, %v380
    %v493 = vpack.c.b16 %v389, %v381
    %v494 = vpack.c.b16 %v390, %v382
    %v495 = vpack.c.b16 %v391, %v383
    %v496 = vpack.c.b16 %v392, %v384
    %v497 = vpack.c.b16 %v401, %v393
    %v498 = vpack.c.b16 %v402, %v394
    %v499 = vpack.c.b16 %v403, %v395
    %v500 = vpack.c.b16 %v404, %v396
    %v501 = vpack.c.b16 %v405, %v397
    %v502 = vpack.c.b16 %v406, %v398
    %v503 = vpack.c.b16 %v407, %v399
    %v504 = vpack.c.b16 %v408, %v400
    %v505 = vpack.c.b16 %v417, %v409
    %v506 = vpack.c.b16 %v418, %v410
    %v507 = vpack.c.b16 %v419, %v411
    %v508 = vpack.c.b16 %v420, %v412
    %v509 = vpack.c.b16 %v421, %v413
    %v510 = vpack.c.b16 %v422, %v414
    %v511 = vpack.c.b16 %v423, %v415
    %v512 = vpack.c.b16 %v424, %v416
    %v513 = vpack.c.b16 %v433, %v425
    %v514 = vpack.c.b16 %v434, %v426
    %v515 = vpack.c.b16 %v435, %v427
    %v516 = vpack.c.b16 %v436, %v428
    %v517 = vpack.c.b16 %v437, %v429
    %v518 = vpack.c.b16 %v438, %v430
    %v519 = vpack.c.b16 %v439, %v431
    %v520 = vpack.c.b16 %v440, %v432
    %v521 = vpack.c.b16 %v449, %v441
    %v522 = vpack.c.b16 %v450, %v442
    %v523 = vpack.c.b16 %v451, %v443
    %v524 = vpack.c.b16 %v452, %v444
    %v525 = vpack.c.b16 %v453, %v445
    %v526 = vpack.c.b16 %v454, %v446
    %v527 = vpack.c.b16 %v455, %v447
    %v528 = vpack.c.b16 %v456, %v448
    %v529 = vpack.c.b16 %v465, %v457
    %v530 = vpack.c.b16 %v466, %v458
    %v531 = vpack.c.b16 %v467, %v459
    %v532 = vpack.c.b16 %v468, %v460
    %v533 = vpack.c.b16 %v469, %v461
    %v534 = vpack.c.b16 %v470, %v462
    %v535 = vpack.c.b16 %v471, %v463
    %v536 = vpack.c.b16 %v472, %v464
    %601 = vmatprep.subr.bf16.mxu0 %v474
    %602 = vmatpush1.bf16.msra.mxu0 %v473
    %603 = vmatprep.subr.bf16.mxu0 %v482
    %604 = vmatpush1.bf16.msra.mxu0 %v481
    %605 = vmatprep.subr.bf16.mxu0 %v490
    %606 = vmatpush1.bf16.msra.mxu0 %v489
    %607 = vmatprep.subr.bf16.mxu0 %v498
    %608 = vmatpush1.bf16.msra.mxu0 %v497
    %609 = vmatprep.subr.bf16.mxu0 %v506
    %610 = vmatpush1.bf16.msra.mxu0 %v505
    %611 = vmatprep.subr.bf16.mxu0 %v514
    %612 = vmatpush1.bf16.msra.mxu0 %v513
    %613 = vmatprep.subr.bf16.mxu0 %v522
    %614 = vmatpush1.bf16.msra.mxu0 %v521
    %615 = vmatprep.subr.bf16.mxu0 %v530
    %616 = vmatpush1.bf16.msra.mxu0 %v529
    %617 = vmatprep.subr.bf16.mxu0 0
    %618 = vmatpush1.bf16.msra.mxu0 0
    %619 = vmatprep.subr.bf16.mxu0 0
    %620 = vmatpush1.bf16.msra.mxu0 0
    %621 = vmatprep.subr.bf16.mxu0 0
    %622 = vmatpush1.bf16.msra.mxu0 0
    %623 = vmatprep.subr.bf16.mxu0 0
    %624 = vmatpush1.bf16.msra.mxu0 0
    %625 = vmatprep.subr.bf16.mxu0 0
    %626 = vmatpush1.bf16.msra.mxu0 0
    %627 = vmatprep.subr.bf16.mxu0 0
    %628 = vmatpush1.bf16.msra.mxu0 0
    %629 = vmatprep.subr.bf16.mxu0 0
    %630 = vmatpush1.bf16.msra.mxu0 0
    %631 = vmatprep.subr.bf16.mxu0 0
    %632 = vmatpush1.bf16.msra.mxu0 0
    %633 = vmatprep.mubr.bf16.mxu0 0
    %634 = vmatmul.mubr.bf16.gmra.mrb[0].mxu0 %v174
    %v635 = vpop.f32.mrb[0].mxu0
    %v636 = vadd.f32 %v244, %v635
    %v637 = vpop.f32.mrb[0].mxu0
    %v638 = vadd.f32 %v248, %v637
    %v639 = vpop.f32.mrb[0].mxu0
    %v640 = vadd.f32 %v244, %v639
    %v641 = vpop.f32.mrb[0].mxu0
    %v642 = vadd.f32 %v248, %v641
    %643 = vdwg.mxu0
    %644 = vmatprep.subr.bf16.mxu0 %v476
    %645 = vmatpush1.bf16.msra.mxu0 %v475
    %646 = vmatprep.subr.bf16.mxu0 %v484
    %647 = vmatpush1.bf16.msra.mxu0 %v483
    %648 = vmatprep.subr.bf16.mxu0 %v492
    %649 = vmatpush1.bf16.msra.mxu0 %v491
    %650 = vmatprep.subr.bf16.mxu0 %v500
    %651 = vmatpush1.bf16.msra.mxu0 %v499
    %652 = vmatprep.subr.bf16.mxu0 %v508
    %653 = vmatpush1.bf16.msra.mxu0 %v507
    %654 = vmatprep.subr.bf16.mxu0 %v516
    %655 = vmatpush1.bf16.msra.mxu0 %v515
    %656 = vmatprep.subr.bf16.mxu0 %v524
    %657 = vmatpush1.bf16.msra.mxu0 %v523
    %658 = vmatprep.subr.bf16.mxu0 %v532
    %659 = vmatpush1.bf16.msra.mxu0 %v531
    %660 = vmatprep.subr.bf16.mxu0 0
    %661 = vmatpush1.bf16.msra.mxu0 0
    %662 = vmatprep.subr.bf16.mxu0 0
    %663 = vmatpush1.bf16.msra.mxu0 0
    %664 = vmatprep.subr.bf16.mxu0 0
    %665 = vmatpush1.bf16.msra.mxu0 0
    %666 = vmatprep.subr.bf16.mxu0 0
    %667 = vmatpush1.bf16.msra.mxu0 0
    %668 = vmatprep.subr.bf16.mxu0 0
    %669 = vmatpush1.bf16.msra.mxu0 0
    %670 = vmatprep.subr.bf16.mxu0 0
    %671 = vmatpush1.bf16.msra.mxu0 0
    %672 = vmatprep.subr.bf16.mxu0 0
    %673 = vmatpush1.bf16.msra.mxu0 0
    %674 = vmatprep.subr.bf16.mxu0 0
    %675 = vmatpush1.bf16.msra.mxu0 0
    %676 = vmatprep.mubr.bf16.mxu0 0
    %677 = vmatmul.mubr.bf16.gmra.mrb[0].mxu0 %v174
    %v678 = vpop.f32.mrb[0].mxu0
    %v679 = vadd.f32 %v252, %v678
    %v680 = vpop.f32.mrb[0].mxu0
    %v681 = vadd.f32 %v256, %v680
    %v682 = vpop.f32.mrb[0].mxu0
    %v683 = vadd.f32 %v252, %v682
    %v684 = vpop.f32.mrb[0].mxu0
    %v685 = vadd.f32 %v256, %v684
    %686 = vdwg.mxu0
    %687 = vmatprep.subr.bf16.mxu0 %v478
    %688 = vmatpush1.bf16.msra.mxu0 %v477
    %689 = vmatprep.subr.bf16.mxu0 %v486
    %690 = vmatpush1.bf16.msra.mxu0 %v485
    %691 = vmatprep.subr.bf16.mxu0 %v494
    %692 = vmatpush1.bf16.msra.mxu0 %v493
    %693 = vmatprep.subr.bf16.mxu0 %v502
    %694 = vmatpush1.bf16.msra.mxu0 %v501
    %695 = vmatprep.subr.bf16.mxu0 %v510
    %696 = vmatpush1.bf16.msra.mxu0 %v509
    %697 = vmatprep.subr.bf16.mxu0 %v518
    %698 = vmatpush1.bf16.msra.mxu0 %v517
    %699 = vmatprep.subr.bf16.mxu0 %v526
    %700 = vmatpush1.bf16.msra.mxu0 %v525
    %701 = vmatprep.subr.bf16.mxu0 %v534
    %702 = vmatpush1.bf16.msra.mxu0 %v533
    %703 = vmatprep.subr.bf16.mxu0 0
    %704 = vmatpush1.bf16.msra.mxu0 0
    %705 = vmatprep.subr.bf16.mxu0 0
    %706 = vmatpush1.bf16.msra.mxu0 0
    %707 = vmatprep.subr.bf16.mxu0 0
    %708 = vmatpush1.bf16.msra.mxu0 0
    %709 = vmatprep.subr.bf16.mxu0 0
    %710 = vmatpush1.bf16.msra.mxu0 0
    %711 = vmatprep.subr.bf16.mxu0 0
    %712 = vmatpush1.bf16.msra.mxu0 0
    %713 = vmatprep.subr.bf16.mxu0 0
    %714 = vmatpush1.bf16.msra.mxu0 0
    %715 = vmatprep.subr.bf16.mxu0 0
    %716 = vmatpush1.bf16.msra.mxu0 0
    %717 = vmatprep.subr.bf16.mxu0 0
    %718 = vmatpush1.bf16.msra.mxu0 0
    %719 = vmatprep.mubr.bf16.mxu0 0
    %720 = vmatmul.mubr.bf16.gmra.mrb[0].mxu0 %v174
    %v721 = vpop.f32.mrb[0].mxu0
    %v722 = vadd.f32 %v260, %v721
    %v723 = vpop.f32.mrb[0].mxu0
    %v724 = vadd.f32 %v264, %v723
    %v725 = vpop.f32.mrb[0].mxu0
    %v726 = vadd.f32 %v260, %v725
    %v727 = vpop.f32.mrb[0].mxu0
    %v728 = vadd.f32 %v264, %v727
    %729 = vdwg.mxu0
    %730 = vmatprep.subr.bf16.mxu0 %v480
    %731 = vmatpush1.bf16.msra.mxu0 %v479
    %732 = vmatprep.subr.bf16.mxu0 %v488
    %733 = vmatpush1.bf16.msra.mxu0 %v487
    %734 = vmatprep.subr.bf16.mxu0 %v496
    %735 = vmatpush1.bf16.msra.mxu0 %v495
    %736 = vmatprep.subr.bf16.mxu0 %v504
    %737 = vmatpush1.bf16.msra.mxu0 %v503
    %738 = vmatprep.subr.bf16.mxu0 %v512
    %739 = vmatpush1.bf16.msra.mxu0 %v511
    %740 = vmatprep.subr.bf16.mxu0 %v520
    %741 = vmatpush1.bf16.msra.mxu0 %v519
    %742 = vmatprep.subr.bf16.mxu0 %v528
    %743 = vmatpush1.bf16.msra.mxu0 %v527
    %744 = vmatprep.subr.bf16.mxu0 %v536
    %745 = vmatpush1.bf16.msra.mxu0 %v535
    %746 = vmatprep.subr.bf16.mxu0 0
    %747 = vmatpush1.bf16.msra.mxu0 0
    %748 = vmatprep.subr.bf16.mxu0 0
    %749 = vmatpush1.bf16.msra.mxu0 0
    %750 = vmatprep.subr.bf16.mxu0 0
    %751 = vmatpush1.bf16.msra.mxu0 0
    %752 = vmatprep.subr.bf16.mxu0 0
    %753 = vmatpush1.bf16.msra.mxu0 0
    %754 = vmatprep.subr.bf16.mxu0 0
    %755 = vmatpush1.bf16.msra.mxu0 0
    %756 = vmatprep.subr.bf16.mxu0 0
    %757 = vmatpush1.bf16.msra.mxu0 0
    %758 = vmatprep.subr.bf16.mxu0 0
    %759 = vmatpush1.bf16.msra.mxu0 0
    %760 = vmatprep.subr.bf16.mxu0 0
    %761 = vmatpush1.bf16.msra.mxu0 0
    %762 = vmatprep.mubr.bf16.mxu0 0
    %763 = vmatmul.mubr.bf16.gmra.mrb[0].mxu0 %v174
    %v764 = vpop.f32.mrb[0].mxu0
    %v765 = vadd.f32 %v268, %v764
    %v766 = vpop.f32.mrb[0].mxu0
    %v767 = vadd.f32 %v272, %v766
    %v768 = vpop.f32.mrb[0].mxu0
    %v769 = vadd.f32 %v268, %v768
    %v770 = vpop.f32.mrb[0].mxu0
    %v771 = vadd.f32 %v272, %v770
    %772 = vdwg.mxu0
    %v773 = vmax.f32 %v636, 0.0
    %v774 = vmax.f32 %v638, 0.0
    %v775 = vmax.f32 %v679, 0.0
    %v776 = vmax.f32 %v681, 0.0
    %v777 = vmax.f32 %v722, 0.0
    %v778 = vmax.f32 %v724, 0.0
    %v779 = vmax.f32 %v765, 0.0
    %v780 = vmax.f32 %v767, 0.0
    %v781 = vmax.f32 %v640, 0.0
    %v782 = vmax.f32 %v642, 0.0
    %v783 = vmax.f32 %v683, 0.0
    %v784 = vmax.f32 %v685, 0.0
    %v785 = vmax.f32 %v726, 0.0
    %v786 = vmax.f32 %v728, 0.0
    %v787 = vmax.f32 %v769, 0.0
    %v788 = vmax.f32 %v771, 0.0
    %v789 = vld [vmem:[%s5] sm:$0xff]
    %v791 = vlaneseq
    %v792 = vshrl.u32 %v791, 7
    %v793 = vsub.s32 0, %v792
    %v794 = vrot.slane %v789, %v793
    %v795 = vlaneseq
    %v796 = vshrl.u32 %v795, 7
    %v797 = vsub.s32 1, %v796
    %v798 = vrot.slane %v789, %v797
    %v799 = vlaneseq
    %v800 = vshrl.u32 %v799, 7
    %v801 = vsub.s32 2, %v800
    %v802 = vrot.slane %v789, %v801
    %v803 = vlaneseq
    %v804 = vshrl.u32 %v803, 7
    %v805 = vsub.s32 3, %v804
    %v806 = vrot.slane %v789, %v805
    %v807 = vlaneseq
    %v808 = vshrl.u32 %v807, 7
    %v809 = vsub.s32 4, %v808
    %v810 = vrot.slane %v789, %v809
    %v811 = vlaneseq
    %v812 = vshrl.u32 %v811, 7
    %v813 = vsub.s32 5, %v812
    %v814 = vrot.slane %v789, %v813
    %v815 = vlaneseq
    %v816 = vshrl.u32 %v815, 7
    %v817 = vsub.s32 6, %v816
    %v818 = vrot.slane %v789, %v817
    %v819 = vlaneseq
    %v820 = vshrl.u32 %v819, 7
    %v821 = vsub.s32 7, %v820
    %v822 = vrot.slane %v789, %v821
    %v831 = vmul.f32 %v773, %v794
    %v832 = vmul.f32 %v774, %v798
    %v833 = vmul.f32 %v775, %v802
    %v834 = vmul.f32 %v776, %v806
    %v835 = vmul.f32 %v777, %v810
    %v836 = vmul.f32 %v778, %v814
    %v837 = vmul.f32 %v779, %v818
    %v838 = vmul.f32 %v780, %v822
    %v839 = vmul.f32 %v781, %v794
    %v840 = vmul.f32 %v782, %v798
    %v841 = vmul.f32 %v783, %v802
    %v842 = vmul.f32 %v784, %v806
    %v843 = vmul.f32 %v785, %v810
    %v844 = vmul.f32 %v786, %v814
    %v845 = vmul.f32 %v787, %v818
    %v846 = vmul.f32 %v788, %v822
    %v847 = vadd.f32 %v831, %v832
    %v848 = vadd.f32 %v847, %v833
    %v849 = vadd.f32 %v848, %v834
    %v850 = vadd.f32 %v849, %v835
    %v851 = vadd.f32 %v850, %v836
    %v852 = vadd.f32 %v851, %v837
    %v853 = vadd.f32 %v852, %v838
    %854 = vadd.xlane.f32.xlu0 %v853
    %v855 = vpop.xlane.xlu0 %854
    %v856 = vadd.f32 %v839, %v840
    %v857 = vadd.f32 %v856, %v841
    %v858 = vadd.f32 %v857, %v842
    %v859 = vadd.f32 %v858, %v843
    %v860 = vadd.f32 %v859, %v844
    %v861 = vadd.f32 %v860, %v845
    %v862 = vadd.f32 %v861, %v846
    %863 = vadd.xlane.f32.xlu0 %v862
    %v864 = vpop.xlane.xlu0 %863
    %v867 = vlaneseq
    %v868 = vand.u32 %v867, 127
    %v869 = vlaneseq
    %v870 = vshrl.u32 %v869, 7
    %v871 = vsub.s32 %v868, %v870
    %v872 = vrot.slane %v855, %v871
    %v873 = vadd.s32 %v868, 4294967288
    %v874 = vlaneseq
    %v875 = vshrl.u32 %v874, 7
    %v876 = vsub.s32 %v873, %v875
    %v877 = vrot.slane %v864, %v876
    %vm878 = vcmask 130112
    %v879 = vsel %vm878, %v877, %v872
    %vm881 = vcmask 122880
    %882 = vst.msk [vmem:[%s6] sm:$0x1] %vm881, %v879
    // Predicated region
    $region34: #{_fused_forward.1} parent=1 // pred_check
      _
    $region35: #{_fused_forward.1} parent=1 // pred_check_branch
      %884 = sbr.rel (0) target = $region37
    $region36: #{_fused_forward.1} parent=1 // pred_region
      _
    $region37: #{_fused_forward.1} parent=1 // pred_fallthru
      _
    // Predicated region
    $region38: #{_fused_forward.1} parent=1 // pred_check
      _
    $region39: #{_fused_forward.1} parent=1 // pred_check_branch
      %886 = sbr.rel (0) target = $region41
    $region40: #{_fused_forward.1} parent=1 // pred_region
      _
    $region41: #{_fused_forward.1} parent=1 // pred_fallthru
      _
    %887 = vsyncpa [#allocation3], 1
    %888 = vsyncpa [#allocation5], 1

</llo_original>
